<compile_context>
chip_gen: v7x
topology: tpu7x:2x2x1
jax: 0.10.0
libtpu: 0.0.40
codegen_flags: <defaults>
</compile_context>

<pallas_src>
import jax
import jax.numpy as jnp
from jax.experimental import pallas as pl
from jax.experimental.pallas import tpu as pltpu


def _game_recs_kernel(uid_ref, gid_ref, uembT_ref, gembT_ref, o_ref):
    # uid_ref, gid_ref : (1, TB) int32      sample indices for this tile
    # uembT_ref        : (D, n_users) f32   full table, resident in VMEM
    # gembT_ref        : (D, n_games) f32   full table, resident in VMEM
    # o_ref            : (1, TB) f32        lane-dense output tile
    tb = uid_ref.shape[1]
    n_users = uembT_ref.shape[1]
    n_games = gembT_ref.shape[1]
    emb_dtype = uembT_ref.dtype

    uids = uid_ref[...]  # (1, TB)
    gids = gid_ref[...]  # (1, TB)

    # One-hot selection matrices (rows = table entries, cols = samples).
    onehot_u = (jax.lax.broadcasted_iota(jnp.int32, (n_users, tb), 0)
                == uids).astype(emb_dtype)                      # (n_users, TB)
    onehot_g = (jax.lax.broadcasted_iota(jnp.int32, (n_games, tb), 0)
                == gids).astype(emb_dtype)                      # (n_games, TB)

    # Gather: (D, N) @ (N, TB) -> (D, TB); samples along lanes, emb_dim along
    # sublanes.
    u_t = jnp.dot(uembT_ref[...], onehot_u,
                  preferred_element_type=jnp.float32)           # (D, TB)
    g_t = jnp.dot(gembT_ref[...], onehot_g,
                  preferred_element_type=jnp.float32)           # (D, TB)

    # Batched dot product: VPU multiply + sublane reduce, naturally (1, TB).
    o_ref[...] = jnp.sum(u_t * g_t, axis=0, keepdims=True)


def game_recs_forward(samples, user_emb, game_emb, tile_b=None):
    """samples: (B, 2) int; user_emb: (n_users, D); game_emb: (n_games, D)."""
    B = samples.shape[0]
    n_users, emb_dim = user_emb.shape
    n_games = game_emb.shape[0]

    if tile_b is None:
        # Lane-dense (multiple of 128); cap at 512 to limit padding/VMEM.
        tile_b = min(512, 128 * pl.cdiv(B, 128))

    num_tiles = pl.cdiv(B, tile_b)
    b_pad = num_tiles * tile_b

    uid = samples[:, 0].astype(jnp.int32)
    gid = samples[:, 1].astype(jnp.int32)
    # Pad with index 0 (always valid); padded results are sliced off below.
    uid = jnp.pad(uid, (0, b_pad - B)).reshape(num_tiles, tile_b)
    gid = jnp.pad(gid, (0, b_pad - B)).reshape(num_tiles, tile_b)

    # Transposed tables: emb_dim on sublanes, table rows on lanes.
    user_emb_t = jnp.asarray(user_emb, jnp.float32).T   # (D, n_users)
    game_emb_t = jnp.asarray(game_emb, jnp.float32).T   # (D, n_games)

    out = pl.pallas_call(
        _game_recs_kernel,
        out_shape=jax.ShapeDtypeStruct((num_tiles, tile_b), jnp.float32),
        grid=(num_tiles,),
        in_specs=[
            pl.BlockSpec((1, tile_b), lambda i: (i, 0)),          # uid tile
            pl.BlockSpec((1, tile_b), lambda i: (i, 0)),          # gid tile
            pl.BlockSpec((emb_dim, n_users), lambda i: (0, 0)),   # full table
            pl.BlockSpec((emb_dim, n_games), lambda i: (0, 0)),   # full table
        ],
        out_specs=pl.BlockSpec((1, tile_b), lambda i: (i, 0)),
        compiler_params=pltpu.CompilerParams(
            dimension_semantics=("parallel",)),
    )(uid, gid, user_emb_t, game_emb_t)

    return out.reshape(-1)[:B]


def xavier_uniform(key, shape):
    # matches nn.init.xavier_uniform_ for a 2-D weight
    fan_in, fan_out = shape
    bound = (6.0 / (fan_in + fan_out)) ** 0.5
    return jax.random.uniform(key, shape, jnp.float32, -bound, bound)


if __name__ == "__main__":
    n_users, n_games, emb_dim = 16, 12, 32
    B = 8

    key = jax.random.PRNGKey(0)
    k1, k2, k3, k4 = jax.random.split(key, 4)

    user_emb = xavier_uniform(k1, (n_users, emb_dim))
    game_emb = xavier_uniform(k2, (n_games, emb_dim))

    user_ids = jax.random.randint(k3, (B,), 0, n_users, dtype=jnp.int32)
    game_ids = jax.random.randint(k4, (B,), 0, n_games, dtype=jnp.int32)
    samples = jnp.stack([user_ids, game_ids], axis=1)  # (B, 2) int32

    out = game_recs_forward(samples, user_emb, game_emb)
    out = jax.block_until_ready(out)

    # reference (pure JAX) check
    ref = jnp.sum(user_emb[samples[:, 0]] * game_emb[samples[:, 1]], axis=1)
    assert out.shape == (B,)
    assert jnp.allclose(out, ref, atol=1e-5), (out, ref)

    print("KERNEL_OK")
</pallas_src>

<mosaic_0001>
module attributes {stable_mosaic.version = 11 : i64} {
  func.func @_game_recs_kernel(%arg0: i32, %arg1: memref<1x128xi32, #tpu.memory_space<vmem>>, %arg2: memref<1x128xi32, #tpu.memory_space<vmem>>, %arg3: memref<32x16xf32, #tpu.memory_space<vmem>>, %arg4: memref<32x12xf32, #tpu.memory_space<vmem>>, %arg5: memref<1x128xf32, #tpu.memory_space<vmem>>) attributes {dimension_semantics = [#tpu.dimension_semantics<parallel>], iteration_bounds = array<i64: 1>, scalar_prefetch = 0 : i64, scratch_operands = 0 : i64, tpu.core_type = #tpu.core_type<tc>, window_params = [{transform_indices = @transform_0, window_bounds = array<i64: 1, 128>}, {transform_indices = @transform_1, window_bounds = array<i64: 1, 128>}, {pipeline_mode = #tpu.pipeline_mode<synchronous>, transform_indices = @transform_2, window_bounds = array<i64: 32, 16>}, {pipeline_mode = #tpu.pipeline_mode<synchronous>, transform_indices = @transform_3, window_bounds = array<i64: 32, 12>}, {transform_indices = @transform_4, window_bounds = array<i64: 1, 128>}]} {
    %c0 = arith.constant 0 : index
    %c0_0 = arith.constant 0 : index
    %0 = vector.load %arg1[%c0, %c0_0] : memref<1x128xi32, #tpu.memory_space<vmem>>, vector<1x128xi32>
    %c0_1 = arith.constant 0 : index
    %c0_2 = arith.constant 0 : index
    %1 = vector.load %arg2[%c0_1, %c0_2] : memref<1x128xi32, #tpu.memory_space<vmem>>, vector<1x128xi32>
    %2 = tpu.iota {dimensions = array<i32: 0>} : vector<16x128xi32>
    %3 = vector.broadcast %0 : vector<1x128xi32> to vector<16x128xi32>
    %4 = arith.cmpi eq, %2, %3 : vector<16x128xi32>
    %5 = arith.extui %4 : vector<16x128xi1> to vector<16x128xi32>
    %6 = arith.sitofp %5 : vector<16x128xi32> to vector<16x128xf32>
    %7 = tpu.iota {dimensions = array<i32: 0>} : vector<12x128xi32>
    %8 = vector.broadcast %1 : vector<1x128xi32> to vector<12x128xi32>
    %9 = arith.cmpi eq, %7, %8 : vector<12x128xi32>
    %10 = arith.extui %9 : vector<12x128xi1> to vector<12x128xi32>
    %11 = arith.sitofp %10 : vector<12x128xi32> to vector<12x128xf32>
    %c0_3 = arith.constant 0 : index
    %c0_4 = arith.constant 0 : index
    %12 = vector.load %arg3[%c0_3, %c0_4] : memref<32x16xf32, #tpu.memory_space<vmem>>, vector<32x16xf32>
    %cst = arith.constant dense<0.000000e+00> : vector<32x128xf32>
    %13 = tpu.matmul %12, %6, %cst {dimension_numbers = #tpu.dot_dimension_numbers<[1], [0], [0], [1], [0, 0, 1, 1], [], []>} : vector<32x16xf32>, vector<16x128xf32>, vector<32x128xf32> -> vector<32x128xf32>
    %c0_5 = arith.constant 0 : index
    %c0_6 = arith.constant 0 : index
    %14 = vector.load %arg4[%c0_5, %c0_6] : memref<32x12xf32, #tpu.memory_space<vmem>>, vector<32x12xf32>
    %cst_7 = arith.constant dense<0.000000e+00> : vector<32x128xf32>
    %15 = tpu.matmul %14, %11, %cst_7 {dimension_numbers = #tpu.dot_dimension_numbers<[1], [0], [0], [1], [0, 0, 1, 1], [], []>} : vector<32x12xf32>, vector<12x128xf32>, vector<32x128xf32> -> vector<32x128xf32>
    %16 = arith.mulf %13, %15 : vector<32x128xf32>
    %cst_8 = arith.constant dense<0.000000e+00> : vector<128xf32>
    %17 = vector.multi_reduction <add>, %16, %cst_8 [0] : vector<32x128xf32> to vector<128xf32>
    %18 = vector.shape_cast %17 : vector<128xf32> to vector<1x128xf32>
    %c0_9 = arith.constant 0 : index
    %c0_10 = arith.constant 0 : index
    %19 = vector.load %arg5[%c0_9, %c0_10] : memref<1x128xf32, #tpu.memory_space<vmem>>, vector<1x128xf32>
    tpu.vector_store %arg5[%c0_9, %c0_10], %18 {strides = array<i32>} : memref<1x128xf32, #tpu.memory_space<vmem>>, vector<1x128xf32>,
    return
  }
  func.func @transform_0(%arg0: i32) -> (i32, i32) {
    %c0_i32 = arith.constant 0 : i32
    %c0_i32_0 = arith.constant 0 : i32
    return %arg0, %c0_i32 : i32, i32
  }
  func.func @transform_1(%arg0: i32) -> (i32, i32) {
    %c0_i32 = arith.constant 0 : i32
    %c0_i32_0 = arith.constant 0 : i32
    return %arg0, %c0_i32 : i32, i32
  }
  func.func @transform_2(%arg0: i32) -> (i32, i32) {
    %c0_i32 = arith.constant 0 : i32
    %c0_i32_0 = arith.constant 0 : i32
    %c0_i32_1 = arith.constant 0 : i32
    return %c0_i32, %c0_i32_0 : i32, i32
  }
  func.func @transform_3(%arg0: i32) -> (i32, i32) {
    %c0_i32 = arith.constant 0 : i32
    %c0_i32_0 = arith.constant 0 : i32
    %c0_i32_1 = arith.constant 0 : i32
    return %c0_i32, %c0_i32_0 : i32, i32
  }
  func.func @transform_4(%arg0: i32) -> (i32, i32) {
    %c0_i32 = arith.constant 0 : i32
    %c0_i32_0 = arith.constant 0 : i32
    return %arg0, %c0_i32 : i32, i32
  }
}

</mosaic_0001>

<llo_original>
// kernel: tpu_custom_call.1
$region0: #{tpu_custom_call.1}
  #allocation0 [shape = 'u32[]', space=smem, size = 0x4, offset = 0x4, fixed_abs, tag = 'smem constant byte address 0x4 - core index']
  #allocation1 [shape = 'u32[144,128]{1,0:T(1,128)}', space=vmem, size = 0x12000, scoped, tag = 'internal scratch']
  %s0 = inlined_call_operand.vmem [shape: s32[1,128], index: 0, kind: input, shape index: {}]
  %s1 = inlined_call_operand.vmem [shape: s32[1,128], index: 1, kind: input, shape index: {}]
  %s2 = inlined_call_operand.vmem [shape: f32[32,16], index: 2, kind: input, shape index: {}]
  %s3 = inlined_call_operand.vmem [shape: f32[32,12], index: 3, kind: input, shape index: {}]
  %s4 = inlined_call_operand.hbm [shape: f32[1,128], index: 4, kind: output, shape index: {}]
  %s5 = sld [smem:[#allocation0]]
  $region26: #{tpu_custom_call.1} parent=0
    _
  %s7 = ssub.s32 1, %s5
  %s8 = scalar_select 0, %s7, %s5
  $region1: #{tpu_custom_call.1} parent=0
    #allocation2 [shape = 'u8[512]{0}', space=vmem, size = 0x400, scoped, tag = 'output window, operand 0, single buffered']
    #allocation3 [shape = 's32[1]{0}', space=sflag, size = 0x4, scoped, tag = 'scoped memory for tpu_custom_call.1']
    %9 = vsyncpa [#allocation3], 0
    // Predicated region
    $region2: #{tpu_custom_call.1} parent=1 // pred_check
      _
    $region3: #{tpu_custom_call.1} parent=1 // pred_check_branch
      %11 = sbr.rel (0) target = $region5
    $region4: #{tpu_custom_call.1} parent=1 // pred_region
      _
    $region5: #{tpu_custom_call.1} parent=1 // pred_fallthru
      _
    // Predicated region
    $region6: #{tpu_custom_call.1} parent=1 // pred_check
      _
    $region7: #{tpu_custom_call.1} parent=1 // pred_check_branch
      %13 = sbr.rel (0) target = $region9
    $region8: #{tpu_custom_call.1} parent=1 // pred_region
      _
    $region9: #{tpu_custom_call.1} parent=1 // pred_fallthru
      _
    // Predicated region
    $region10: #{tpu_custom_call.1} parent=1 // pred_check
      _
    $region11: #{tpu_custom_call.1} parent=1 // pred_check_branch
      %15 = sbr.rel (0) target = $region13
    $region12: #{tpu_custom_call.1} parent=1 // pred_region
      _
    $region13: #{tpu_custom_call.1} parent=1 // pred_fallthru
      _
    // Predicated region
    $region14: #{tpu_custom_call.1} parent=1 // pred_check
      _
    $region15: #{tpu_custom_call.1} parent=1 // pred_check_branch
      %17 = sbr.rel (0) target = $region17
    $region16: #{tpu_custom_call.1} parent=1 // pred_region
      _
    $region17: #{tpu_custom_call.1} parent=1 // pred_fallthru
      _
    %v18 = vld [vmem:[%s0] sm:$0x1]
    %v19 = vld [vmem:[%s1] sm:$0x1]
    %v20 = vlaneseq
    %v21 = vshrl.u32 %v20, 7
    %v22 = vadd.s32 %v21, 8
    %v23 = vlaneseq
    %v24 = vshrl.u32 %v23, 7
    %v25 = vsub.s32 0, %v24
    %v26 = vrot.slane %v18, %v25
    %vm27 = vcmp.eq.s32.totalorder %v21, %v26
    %vm28 = vcmp.eq.s32.totalorder %v22, %v26
    %v29 = vsel %vm27, 1, 0
    %v30 = vsel %vm28, 1, 0
    %v31 = vcvt.s32.f32 %v29
    %v32 = vcvt.s32.f32 %v30
    %v33 = vlaneseq
    %v34 = vshrl.u32 %v33, 7
    %v35 = vsub.s32 0, %v34
    %v36 = vrot.slane %v19, %v35
    %vm37 = vcmp.eq.s32.totalorder %v21, %v36
    %vm38 = vcmp.eq.s32.totalorder %v22, %v36
    %v39 = vsel %vm37, 1, 0
    %v40 = vsel %vm38, 1, 0
    %v41 = vcvt.s32.f32 %v39
    %v42 = vcvt.s32.f32 %v40
    %v43 = vld [vmem:[%s2] sm:$0xff]
    %v44 = vld [vmem:[%s2 + $0x8] sm:$0xff]
    %v45 = vld [vmem:[%s2 + $0x10] sm:$0xff]
    %v46 = vld [vmem:[%s2 + $0x18] sm:$0xff]
    %vm47 = vcmask 130048
    %v49 = vsel %vm47, %v43, 0
    %v52 = vsel %vm47, %v44, 0
    %v55 = vsel %vm47, %v45, 0
    %v58 = vsel %vm47, %v46, 0
    %60 = vmatprep.subr.mxu0 0.0
    %61 = vmatpush1.msra.mxu0 %v31
    %62 = vmatprep.subr.mxu0 0.0
    %63 = vmatpush1.msra.mxu0 %v32
    %64 = vmatprep.subr.mxu0 0.0
    %65 = vmatpush1.msra.mxu0 0.0
    %66 = vmatprep.subr.mxu0 0.0
    %67 = vmatpush1.msra.mxu0 0.0
    %68 = vmatprep.subr.mxu0 0.0
    %69 = vmatpush1.msra.mxu0 0.0
    %70 = vmatprep.subr.mxu0 0.0
    %71 = vmatpush1.msra.mxu0 0.0
    %72 = vmatprep.subr.mxu0 0.0
    %73 = vmatpush1.msra.mxu0 0.0
    %74 = vmatprep.subr.mxu0 0.0
    %75 = vmatpush1.msra.mxu0 0.0
    %76 = vmatprep.subr.mxu0 0.0
    %77 = vmatpush1.msra.mxu0 0.0
    %78 = vmatprep.subr.mxu0 0.0
    %79 = vmatpush1.msra.mxu0 0.0
    %80 = vmatprep.subr.mxu0 0.0
    %81 = vmatpush1.msra.mxu0 0.0
    %82 = vmatprep.subr.mxu0 0.0
    %83 = vmatpush1.msra.mxu0 0.0
    %84 = vmatprep.subr.mxu0 0.0
    %85 = vmatpush1.msra.mxu0 0.0
    %86 = vmatprep.subr.mxu0 0.0
    %87 = vmatpush1.msra.mxu0 0.0
    %88 = vmatprep.subr.mxu0 0.0
    %89 = vmatpush1.msra.mxu0 0.0
    %90 = vmatprep.subr.mxu0 0.0
    %91 = vmatpush1.msra.mxu0 0.0
    %92 = vmatprep.subr.mxu0 0.0
    %93 = vmatpush1.msra.mxu0 0.0
    %94 = vmatprep.subr.mxu0 0.0
    %95 = vmatpush1.msra.mxu0 0.0
    %96 = vmatprep.subr.mxu0 0.0
    %97 = vmatpush1.msra.mxu0 0.0
    %98 = vmatprep.subr.mxu0 0.0
    %99 = vmatpush1.msra.mxu0 0.0
    %100 = vmatprep.subr.mxu0 0.0
    %101 = vmatpush1.msra.mxu0 0.0
    %102 = vmatprep.subr.mxu0 0.0
    %103 = vmatpush1.msra.mxu0 0.0
    %104 = vmatprep.subr.mxu0 0.0
    %105 = vmatpush1.msra.mxu0 0.0
    %106 = vmatprep.subr.mxu0 0.0
    %107 = vmatpush1.msra.mxu0 0.0
    %108 = vmatprep.subr.mxu0 0.0
    %109 = vmatpush1.msra.mxu0 0.0
    %110 = vmatprep.subr.mxu0 0.0
    %111 = vmatpush1.msra.mxu0 0.0
    %112 = vmatprep.subr.mxu0 0.0
    %113 = vmatpush1.msra.mxu0 0.0
    %114 = vmatprep.subr.mxu0 0.0
    %115 = vmatpush1.msra.mxu0 0.0
    %116 = vmatprep.subr.mxu0 0.0
    %117 = vmatpush1.msra.mxu0 0.0
    %118 = vmatprep.subr.mxu0 0.0
    %119 = vmatpush1.msra.mxu0 0.0
    %120 = vmatprep.subr.mxu0 0.0
    %121 = vmatpush1.msra.mxu0 0.0
    %122 = vmatprep.subr.mxu0 0.0
    %123 = vmatpush1.msra.mxu0 0.0
    %124 = vmatprep.mubr.f32.mxu0 0.0
    %125 = vmatmul.mubr.f32.gmra.mrb[0].mxu0 %v49
    %v126 = vpop.f32.mrb[0].mxu0
    %v127 = vadd.f32 0.0, %v126
    %v128 = vpop.f32.mrb[0].mxu0
    %129 = vmatprep.mubr.f32.mxu0 0.0
    %130 = vmatmul.mubr.f32.gmra.mrb[0].mxu0 %v52
    %v131 = vpop.f32.mrb[0].mxu0
    %v132 = vadd.f32 0.0, %v131
    %v133 = vpop.f32.mrb[0].mxu0
    %134 = vmatprep.mubr.f32.mxu0 0.0
    %135 = vmatmul.mubr.f32.gmra.mrb[0].mxu0 %v55
    %v136 = vpop.f32.mrb[0].mxu0
    %v137 = vadd.f32 0.0, %v136
    %v138 = vpop.f32.mrb[0].mxu0
    %139 = vmatprep.mubr.f32.mxu0 0.0
    %140 = vmatmul.mubr.f32.gmra.mrb[0].mxu0 %v58
    %v141 = vpop.f32.mrb[0].mxu0
    %v142 = vadd.f32 0.0, %v141
    %v143 = vpop.f32.mrb[0].mxu0
    %144 = vdwg.mxu0
    %v145 = vld [vmem:[%s3] sm:$0xff]
    %v146 = vld [vmem:[%s3 + $0x8] sm:$0xff]
    %v147 = vld [vmem:[%s3 + $0x10] sm:$0xff]
    %v148 = vld [vmem:[%s3 + $0x18] sm:$0xff]
    %vm149 = vcmask 97280
    %v151 = vsel %vm149, %v145, 0
    %v154 = vsel %vm149, %v146, 0
    %v157 = vsel %vm149, %v147, 0
    %v160 = vsel %vm149, %v148, 0
    %vm162 = vcmask 1043456
    %v164 = vsel %vm162, %v42, 0
    %166 = vmatprep.subr.mxu0 0.0
    %167 = vmatpush1.msra.mxu0 %v41
    %168 = vmatprep.subr.mxu0 0.0
    %169 = vmatpush1.msra.mxu0 %v164
    %170 = vmatprep.subr.mxu0 0.0
    %171 = vmatpush1.msra.mxu0 0.0
    %172 = vmatprep.subr.mxu0 0.0
    %173 = vmatpush1.msra.mxu0 0.0
    %174 = vmatprep.subr.mxu0 0.0
    %175 = vmatpush1.msra.mxu0 0.0
    %176 = vmatprep.subr.mxu0 0.0
    %177 = vmatpush1.msra.mxu0 0.0
    %178 = vmatprep.subr.mxu0 0.0
    %179 = vmatpush1.msra.mxu0 0.0
    %180 = vmatprep.subr.mxu0 0.0
    %181 = vmatpush1.msra.mxu0 0.0
    %182 = vmatprep.subr.mxu0 0.0
    %183 = vmatpush1.msra.mxu0 0.0
    %184 = vmatprep.subr.mxu0 0.0
    %185 = vmatpush1.msra.mxu0 0.0
    %186 = vmatprep.subr.mxu0 0.0
    %187 = vmatpush1.msra.mxu0 0.0
    %188 = vmatprep.subr.mxu0 0.0
    %189 = vmatpush1.msra.mxu0 0.0
    %190 = vmatprep.subr.mxu0 0.0
    %191 = vmatpush1.msra.mxu0 0.0
    %192 = vmatprep.subr.mxu0 0.0
    %193 = vmatpush1.msra.mxu0 0.0
    %194 = vmatprep.subr.mxu0 0.0
    %195 = vmatpush1.msra.mxu0 0.0
    %196 = vmatprep.subr.mxu0 0.0
    %197 = vmatpush1.msra.mxu0 0.0
    %198 = vmatprep.subr.mxu0 0.0
    %199 = vmatpush1.msra.mxu0 0.0
    %200 = vmatprep.subr.mxu0 0.0
    %201 = vmatpush1.msra.mxu0 0.0
    %202 = vmatprep.subr.mxu0 0.0
    %203 = vmatpush1.msra.mxu0 0.0
    %204 = vmatprep.subr.mxu0 0.0
    %205 = vmatpush1.msra.mxu0 0.0
    %206 = vmatprep.subr.mxu0 0.0
    %207 = vmatpush1.msra.mxu0 0.0
    %208 = vmatprep.subr.mxu0 0.0
    %209 = vmatpush1.msra.mxu0 0.0
    %210 = vmatprep.subr.mxu0 0.0
    %211 = vmatpush1.msra.mxu0 0.0
    %212 = vmatprep.subr.mxu0 0.0
    %213 = vmatpush1.msra.mxu0 0.0
    %214 = vmatprep.subr.mxu0 0.0
    %215 = vmatpush1.msra.mxu0 0.0
    %216 = vmatprep.subr.mxu0 0.0
    %217 = vmatpush1.msra.mxu0 0.0
    %218 = vmatprep.subr.mxu0 0.0
    %219 = vmatpush1.msra.mxu0 0.0
    %220 = vmatprep.subr.mxu0 0.0
    %221 = vmatpush1.msra.mxu0 0.0
    %222 = vmatprep.subr.mxu0 0.0
    %223 = vmatpush1.msra.mxu0 0.0
    %224 = vmatprep.subr.mxu0 0.0
    %225 = vmatpush1.msra.mxu0 0.0
    %226 = vmatprep.subr.mxu0 0.0
    %227 = vmatpush1.msra.mxu0 0.0
    %228 = vmatprep.subr.mxu0 0.0
    %229 = vmatpush1.msra.mxu0 0.0
    %230 = vmatprep.mubr.f32.mxu0 0.0
    %231 = vmatmul.mubr.f32.gmra.mrb[0].mxu0 %v151
    %v232 = vpop.f32.mrb[0].mxu0
    %v233 = vadd.f32 0.0, %v232
    %v234 = vpop.f32.mrb[0].mxu0
    %235 = vmatprep.mubr.f32.mxu0 0.0
    %236 = vmatmul.mubr.f32.gmra.mrb[0].mxu0 %v154
    %v237 = vpop.f32.mrb[0].mxu0
    %v238 = vadd.f32 0.0, %v237
    %v239 = vpop.f32.mrb[0].mxu0
    %240 = vmatprep.mubr.f32.mxu0 0.0
    %241 = vmatmul.mubr.f32.gmra.mrb[0].mxu0 %v157
    %v242 = vpop.f32.mrb[0].mxu0
    %v243 = vadd.f32 0.0, %v242
    %v244 = vpop.f32.mrb[0].mxu0
    %245 = vmatprep.mubr.f32.mxu0 0.0
    %246 = vmatmul.mubr.f32.gmra.mrb[0].mxu0 %v160
    %v247 = vpop.f32.mrb[0].mxu0
    %v248 = vadd.f32 0.0, %v247
    %v249 = vpop.f32.mrb[0].mxu0
    %250 = vdwg.mxu0
    %v251 = vmul.f32 %v127, %v233
    %v252 = vmul.f32 %v132, %v238
    %v253 = vmul.f32 %v137, %v243
    %v254 = vmul.f32 %v142, %v248
    %v255 = vadd.f32 %v251, %v252
    %v256 = vadd.f32 %v255, %v253
    %v257 = vadd.f32 %v256, %v254
    %v258 = vrot.slane %v257, 4
    %v259 = vadd.f32 %v257, %v258
    %v260 = vrot.slane %v259, 2
    %v261 = vadd.f32 %v259, %v260
    %v262 = vrot.slane %v261, 1
    %v263 = vadd.f32 %v261, %v262
    %264 = vst [vmem:[#allocation2] sm:$0x1] %v263
    // Predicated region
    $region18: #{tpu_custom_call.1} parent=1 // pred_check
      _
    $region19: #{tpu_custom_call.1} parent=1 // pred_check_branch
      %266 = sbr.rel (0) target = $region21
    $region20: #{tpu_custom_call.1} parent=1 // pred_region
      %s268 = ssub.s32 16, 16
      %269 = vsyncadd [#allocation3], %s268
      %s271 = sshll.u32 [#allocation2], 4
      %s272 = int_to_ptr.vmem [resolvable:$true] %s271
      %274 = dma.vmem_to_hbm [thread:$0]  %s272, 16, %s4, [#allocation3]
    $region21: #{tpu_custom_call.1} parent=1 // pred_fallthru
      _
    // Predicated region
    $region22: #{tpu_custom_call.1} parent=1 // pred_check
      _
    $region23: #{tpu_custom_call.1} parent=1 // pred_check_branch
      %276 = sbr.rel (0) target = $region25
    $region24: #{tpu_custom_call.1} parent=1 // pred_region
      %277 = dma.done [#allocation3], 16
    $region25: #{tpu_custom_call.1} parent=1 // pred_fallthru
      _
    %278 = vsyncpa [#allocation3], 1

</llo_original>
